<compile_context>
chip_gen: v5e
topology: v5e:2x2
jax: 0.10.0
libtpu: 0.0.40
codegen_flags: <defaults>
</compile_context>

<pallas_src>
import functools

import jax
import jax.numpy as jnp
from jax.experimental import pallas as pl
from jax.experimental.pallas import tpu as pltpu


def _round_up(x: int, m: int) -> int:
    return ((x + m - 1) // m) * m


def mlp_kernel(x_ref, w1_ref, b1_ref, w2_ref, b2_ref, w3_ref, b3_ref, o_ref):
    """One batch tile, transposed layout.

    x_ref : (28, TILE_B)          -- features on sublanes, batch on lanes
    w1_ref: (64, 28)   b1_ref: (64, 1)
    w2_ref: (128, 64)  b2_ref: (128, 1)
    w3_ref: (1, 128)   b3_ref: (1, 1)
    o_ref : (1, TILE_B)
    """
    x = x_ref[...]  # keep native streaming dtype (f32 or bf16)

    # Linear(28 -> 64) + ReLU : (64,28) @ (28,TILE_B) -> (64,TILE_B), f32 acc
    h1 = jnp.dot(w1_ref[...], x, preferred_element_type=jnp.float32) + b1_ref[...]
    h1 = jnp.maximum(h1, 0.0)

    # Linear(64 -> 128) + ReLU : (128,64) @ (64,TILE_B) -> (128,TILE_B)
    h2 = (
        jnp.dot(w2_ref[...], h1.astype(w2_ref.dtype), preferred_element_type=jnp.float32)
        + b2_ref[...]
    )
    h2 = jnp.maximum(h2, 0.0)

    # Linear(128 -> 1) : (1,128) @ (128,TILE_B) -> (1,TILE_B)  (lane-dense out)
    out = (
        jnp.dot(w3_ref[...], h2.astype(w3_ref.dtype), preferred_element_type=jnp.float32)
        + b3_ref[...]
    )
    o_ref[...] = out.astype(o_ref.dtype)


@functools.partial(jax.jit, static_argnames=("tile_b", "compute_dtype"))
def network_forward(x, params, *, tile_b: int = 1024, compute_dtype=jnp.float32):
    """Forward pass equivalent to the PyTorch Network.

    x: (batch, 28) float array (PyTorch layout).
    params: (w1, b1, w2, b2, w3, b3) with PyTorch-shaped weights:
        w1 (64, 28), b1 (64, 1), w2 (128, 64), b2 (128, 1), w3 (1, 128), b3 (1, 1).
    Returns (batch, 1) float32.
    """
    w1, b1, w2, b2, w3, b3 = params
    batch = x.shape[0]

    # Lane-dense transposed layout: (28, B). Batch lives on the lane axis.
    xt = x.astype(compute_dtype).T

    # Tile sizing: multiple of 128 lanes, no bigger than the (padded) batch.
    tile_b = max(128, _round_up(tile_b, 128))
    tile_b = min(tile_b, _round_up(batch, 128))
    b_pad = _round_up(batch, tile_b)
    if b_pad != batch:
        xt = jnp.pad(xt, ((0, 0), (0, b_pad - batch)))

    # Weights stream at the MXU input dtype; biases stay f32 (f32 VPU epilogue).
    w1c = w1.astype(compute_dtype)
    w2c = w2.astype(compute_dtype)
    w3c = w3.astype(compute_dtype)
    b1f = b1.astype(jnp.float32)
    b2f = b2.astype(jnp.float32)
    b3f = b3.astype(jnp.float32)

    grid = (b_pad // tile_b,)

    # Weights/biases: full-array blocks with a constant index_map -> resident
    # in VMEM across all grid steps (DMA'd once). Only x / out stream.
    def const_spec(shape):
        return pl.BlockSpec(shape, lambda i: (0, 0))

    in_specs = [
        pl.BlockSpec((28, tile_b), lambda i: (0, i)),   # x tile
        const_spec((64, 28)),                           # w1
        const_spec((64, 1)),                            # b1
        const_spec((128, 64)),                          # w2
        const_spec((128, 1)),                           # b2
        const_spec((1, 128)),                           # w3
        const_spec((1, 1)),                             # b3
    ]
    out_specs = pl.BlockSpec((1, tile_b), lambda i: (0, i))

    bytes_per_elem = jnp.dtype(compute_dtype).itemsize
    cost = pl.CostEstimate(
        flops=2 * b_pad * (28 * 64 + 64 * 128 + 128 * 1),
        transcendentals=0,
        bytes_accessed=b_pad * 28 * bytes_per_elem  # stream x in
        + b_pad * 1 * 4                             # stream out
        + (64 * 28 + 128 * 64 + 128) * bytes_per_elem
        + (64 + 128 + 1) * 4,                       # resident weights/biases
    )

    out_t = pl.pallas_call(
        mlp_kernel,
        out_shape=jax.ShapeDtypeStruct((1, b_pad), jnp.float32),
        grid=grid,
        in_specs=in_specs,
        out_specs=out_specs,
        compiler_params=pltpu.CompilerParams(
            dimension_semantics=("parallel",),  # megacore split on v7x
        ),
        cost_estimate=cost,
    )(xt, w1c, b1f, w2c, b2f, w3c, b3f)

    # Back to PyTorch layout (batch, 1); drop batch padding.
    return out_t[:, :batch].T


def init_params(key):
    """Deterministic init mirroring nn.Linear (PyTorch uniform fan-in init).

    Weights stored as (out_features, in_features) like PyTorch; biases as
    (out_features, 1) for column broadcasting in the transposed layout.
    """
    k1, k2, k3, k4, k5, k6 = jax.random.split(key, 6)
    s1 = 1.0 / jnp.sqrt(28.0)
    s2 = 1.0 / jnp.sqrt(64.0)
    s3 = 1.0 / jnp.sqrt(128.0)
    w1 = jax.random.uniform(k1, (64, 28), jnp.float32, -s1, s1)
    b1 = jax.random.uniform(k2, (64, 1), jnp.float32, -s1, s1)
    w2 = jax.random.uniform(k3, (128, 64), jnp.float32, -s2, s2)
    b2 = jax.random.uniform(k4, (128, 1), jnp.float32, -s2, s2)
    w3 = jax.random.uniform(k5, (1, 128), jnp.float32, -s3, s3)
    b3 = jax.random.uniform(k6, (1, 1), jnp.float32, -s3, s3)
    return (w1, b1, w2, b2, w3, b3)


def reference_forward(x, params):
    """Pure-JAX reference matching nn.Linear: y = x @ W.T + b."""
    w1, b1, w2, b2, w3, b3 = params
    h1 = jnp.maximum(x @ w1.T + b1.T, 0.0)
    h2 = jnp.maximum(h1 @ w2.T + b2.T, 0.0)
    return h2 @ w3.T + b3.T


if __name__ == "__main__":
    key = jax.random.PRNGKey(0)
    k_x, k_p = jax.random.split(key)

    batch = 8  # small demo batch; feature dim 28 matches the module
    x = jax.random.normal(k_x, (batch, 28), jnp.float32)
    params = init_params(k_p)
    ref = reference_forward(x, params)

    # f32 path: exact (within fp tolerance) match against the reference.
    out = network_forward(x, params, tile_b=1024, compute_dtype=jnp.float32)
    out = jax.block_until_ready(out)
    assert out.shape == (batch, 1), out.shape
    assert jnp.allclose(out, ref, atol=1e-5, rtol=1e-5), "f32 mismatch vs reference"

    # bf16 streaming path (halves x DMA bytes, bf16 MXU on v6e/v7x); f32 accum.
    out_bf16 = network_forward(x, params, tile_b=1024, compute_dtype=jnp.bfloat16)
    out_bf16 = jax.block_until_ready(out_bf16)
    assert out_bf16.shape == (batch, 1), out_bf16.shape
    assert jnp.allclose(out_bf16, ref, atol=1e-1, rtol=1e-1), "bf16 mismatch vs reference"

    print("KERNEL_OK")
</pallas_src>

<mosaic_0001>
module attributes {stable_mosaic.version = 11 : i64} {
  func.func @mlp_kernel(%arg0: i32, %arg1: memref<28x128xf32, #tpu.memory_space<vmem>>, %arg2: memref<64x28xf32, #tpu.memory_space<vmem>>, %arg3: memref<64x1xf32, #tpu.memory_space<vmem>>, %arg4: memref<128x64xf32, #tpu.memory_space<vmem>>, %arg5: memref<128x1xf32, #tpu.memory_space<vmem>>, %arg6: memref<1x128xf32, #tpu.memory_space<vmem>>, %arg7: memref<1x1xf32, #tpu.memory_space<vmem>>, %arg8: memref<1x128xf32, #tpu.memory_space<vmem>>) attributes {dimension_semantics = [#tpu.dimension_semantics<parallel>], iteration_bounds = array<i64: 1>, scalar_prefetch = 0 : i64, scratch_operands = 0 : i64, tpu.core_type = #tpu.core_type<tc>, window_params = [{transform_indices = @transform_0, window_bounds = array<i64: 28, 128>}, {pipeline_mode = #tpu.pipeline_mode<synchronous>, transform_indices = @transform_1, window_bounds = array<i64: 64, 28>}, {pipeline_mode = #tpu.pipeline_mode<synchronous>, transform_indices = @transform_2, window_bounds = array<i64: 64, 1>}, {pipeline_mode = #tpu.pipeline_mode<synchronous>, transform_indices = @transform_3, window_bounds = array<i64: 128, 64>}, {pipeline_mode = #tpu.pipeline_mode<synchronous>, transform_indices = @transform_4, window_bounds = array<i64: 128, 1>}, {pipeline_mode = #tpu.pipeline_mode<synchronous>, transform_indices = @transform_5, window_bounds = array<i64: 1, 128>}, {pipeline_mode = #tpu.pipeline_mode<synchronous>, transform_indices = @transform_6, window_bounds = array<i64: 1, 1>}, {transform_indices = @transform_7, window_bounds = array<i64: 1, 128>}]} {
    %c0 = arith.constant 0 : index
    %c0_0 = arith.constant 0 : index
    %0 = vector.load %arg1[%c0, %c0_0] : memref<28x128xf32, #tpu.memory_space<vmem>>, vector<28x128xf32>
    %c0_1 = arith.constant 0 : index
    %c0_2 = arith.constant 0 : index
    %1 = vector.load %arg2[%c0_1, %c0_2] : memref<64x28xf32, #tpu.memory_space<vmem>>, vector<64x28xf32>
    %cst = arith.constant dense<0.000000e+00> : vector<64x128xf32>
    %2 = tpu.matmul %1, %0, %cst {dimension_numbers = #tpu.dot_dimension_numbers<[1], [0], [0], [1], [0, 0, 1, 1], [], []>} : vector<64x28xf32>, vector<28x128xf32>, vector<64x128xf32> -> vector<64x128xf32>
    %c0_3 = arith.constant 0 : index
    %c0_4 = arith.constant 0 : index
    %3 = vector.load %arg3[%c0_3, %c0_4] : memref<64x1xf32, #tpu.memory_space<vmem>>, vector<64x1xf32>
    %4 = vector.broadcast %3 : vector<64x1xf32> to vector<64x128xf32>
    %5 = arith.addf %2, %4 : vector<64x128xf32>
    %cst_5 = arith.constant 0.000000e+00 : f32
    %6 = vector.broadcast %cst_5 : f32 to vector<64x128xf32>
    %7 = arith.maximumf %5, %6 : vector<64x128xf32>
    %c0_6 = arith.constant 0 : index
    %c0_7 = arith.constant 0 : index
    %8 = vector.load %arg4[%c0_6, %c0_7] : memref<128x64xf32, #tpu.memory_space<vmem>>, vector<128x64xf32>
    %cst_8 = arith.constant dense<0.000000e+00> : vector<128x128xf32>
    %9 = tpu.matmul %8, %7, %cst_8 {dimension_numbers = #tpu.dot_dimension_numbers<[1], [0], [0], [1], [0, 0, 1, 1], [], []>} : vector<128x64xf32>, vector<64x128xf32>, vector<128x128xf32> -> vector<128x128xf32>
    %c0_9 = arith.constant 0 : index
    %c0_10 = arith.constant 0 : index
    %10 = vector.load %arg5[%c0_9, %c0_10] : memref<128x1xf32, #tpu.memory_space<vmem>>, vector<128x1xf32>
    %11 = vector.broadcast %10 : vector<128x1xf32> to vector<128x128xf32>
    %12 = arith.addf %9, %11 : vector<128x128xf32>
    %cst_11 = arith.constant 0.000000e+00 : f32
    %13 = vector.broadcast %cst_11 : f32 to vector<128x128xf32>
    %14 = arith.maximumf %12, %13 : vector<128x128xf32>
    %c0_12 = arith.constant 0 : index
    %c0_13 = arith.constant 0 : index
    %15 = vector.load %arg6[%c0_12, %c0_13] : memref<1x128xf32, #tpu.memory_space<vmem>>, vector<1x128xf32>
    %cst_14 = arith.constant dense<0.000000e+00> : vector<1x128xf32>
    %16 = tpu.matmul %15, %14, %cst_14 {dimension_numbers = #tpu.dot_dimension_numbers<[1], [0], [0], [1], [0, 0, 1, 1], [], []>} : vector<1x128xf32>, vector<128x128xf32>, vector<1x128xf32> -> vector<1x128xf32>
    %c0_15 = arith.constant 0 : index
    %c0_16 = arith.constant 0 : index
    %17 = vector.load %arg7[%c0_15, %c0_16] : memref<1x1xf32, #tpu.memory_space<vmem>>, vector<1x1xf32>
    %18 = vector.broadcast %17 : vector<1x1xf32> to vector<1x128xf32>
    %19 = arith.addf %16, %18 : vector<1x128xf32>
    %c0_17 = arith.constant 0 : index
    %c0_18 = arith.constant 0 : index
    %20 = vector.load %arg8[%c0_17, %c0_18] : memref<1x128xf32, #tpu.memory_space<vmem>>, vector<1x128xf32>
    tpu.vector_store %arg8[%c0_17, %c0_18], %19 {strides = array<i32>} : memref<1x128xf32, #tpu.memory_space<vmem>>, vector<1x128xf32>,
    return
  }
  func.func @transform_0(%arg0: i32) -> (i32, i32) {
    %c0_i32 = arith.constant 0 : i32
    %c0_i32_0 = arith.constant 0 : i32
    return %c0_i32, %arg0 : i32, i32
  }
  func.func @transform_1(%arg0: i32) -> (i32, i32) {
    %c0_i32 = arith.constant 0 : i32
    %c0_i32_0 = arith.constant 0 : i32
    %c0_i32_1 = arith.constant 0 : i32
    return %c0_i32, %c0_i32_0 : i32, i32
  }
  func.func @transform_2(%arg0: i32) -> (i32, i32) {
    %c0_i32 = arith.constant 0 : i32
    %c0_i32_0 = arith.constant 0 : i32
    %c0_i32_1 = arith.constant 0 : i32
    return %c0_i32, %c0_i32_0 : i32, i32
  }
  func.func @transform_3(%arg0: i32) -> (i32, i32) {
    %c0_i32 = arith.constant 0 : i32
    %c0_i32_0 = arith.constant 0 : i32
    %c0_i32_1 = arith.constant 0 : i32
    return %c0_i32, %c0_i32_0 : i32, i32
  }
  func.func @transform_4(%arg0: i32) -> (i32, i32) {
    %c0_i32 = arith.constant 0 : i32
    %c0_i32_0 = arith.constant 0 : i32
    %c0_i32_1 = arith.constant 0 : i32
    return %c0_i32, %c0_i32_0 : i32, i32
  }
  func.func @transform_5(%arg0: i32) -> (i32, i32) {
    %c0_i32 = arith.constant 0 : i32
    %c0_i32_0 = arith.constant 0 : i32
    %c0_i32_1 = arith.constant 0 : i32
    return %c0_i32, %c0_i32_0 : i32, i32
  }
  func.func @transform_6(%arg0: i32) -> (i32, i32) {
    %c0_i32 = arith.constant 0 : i32
    %c0_i32_0 = arith.constant 0 : i32
    %c0_i32_1 = arith.constant 0 : i32
    return %c0_i32, %c0_i32_0 : i32, i32
  }
  func.func @transform_7(%arg0: i32) -> (i32, i32) {
    %c0_i32 = arith.constant 0 : i32
    %c0_i32_0 = arith.constant 0 : i32
    return %c0_i32, %arg0 : i32, i32
  }
}

</mosaic_0001>

<llo_original>
// kernel: network_forward.1
$region0: #{network_forward.1}
  #allocation0 [shape = 'u32[]', space=smem, size = 0x4, offset = 0x4, fixed_abs, tag = 'smem constant byte address 0x4 - core index']
  #allocation1 [shape = 'u32[72,128]{1,0:T(1,128)}', space=vmem, size = 0x9000, scoped, tag = 'internal scratch']
  #allocation2 [shape = 'f32[1,1]{1,0:T(1,128)S(1)}', space=vmem, size = 0x200, scoped, tag = 'scoped memory for network_forward.1']
  %s0 = inlined_call_operand.vmem [shape: f32[28,128], index: 0, kind: input, shape index: {}]
  %s1 = inlined_call_operand.vmem [shape: f32[64,28], index: 1, kind: input, shape index: {}]
  %s2 = inlined_call_operand.vmem [shape: f32[64,1], index: 2, kind: input, shape index: {}]
  %s3 = inlined_call_operand.vmem [shape: f32[128,64], index: 3, kind: input, shape index: {}]
  %s4 = inlined_call_operand.vmem [shape: f32[128,1], index: 4, kind: input, shape index: {}]
  %s5 = inlined_call_operand.vmem [shape: f32[1,128], index: 5, kind: input, shape index: {}]
  %s6 = inlined_call_operand.<no memory space> [shape: f32[1,1], index: 6, kind: input, shape index: {}]
  %s7 = inlined_call_operand.vmem [shape: f32[1,128], index: 7, kind: output, shape index: {}]
  %s8 = sld [smem:[#allocation0]]
  $region38: #{network_forward.1} parent=0
    _
  %s10 = ssub.s32 1, %s8
  %s11 = scalar_select 0, %s10, %s8
  %v12 = vstv %s6
  %13 = vst [vmem:[#allocation2] sm:$0x1] %v12
  // Predicated region
  $region2: #{network_forward.1} parent=0 // pred_check
    _
  $region3: #{network_forward.1} parent=0 // pred_check_branch
    %15 = sbr.rel (0) target = $region5
  $region4: #{network_forward.1} parent=0 // pred_region
    _
  $region5: #{network_forward.1} parent=0 // pred_fallthru
    _
  // Predicated region
  $region6: #{network_forward.1} parent=0 // pred_check
    _
  $region7: #{network_forward.1} parent=0 // pred_check_branch
    %17 = sbr.rel (0) target = $region9
  $region8: #{network_forward.1} parent=0 // pred_region
    _
  $region9: #{network_forward.1} parent=0 // pred_fallthru
    _
  // Predicated region
  $region10: #{network_forward.1} parent=0 // pred_check
    _
  $region11: #{network_forward.1} parent=0 // pred_check_branch
    %19 = sbr.rel (0) target = $region13
  $region12: #{network_forward.1} parent=0 // pred_region
    _
  $region13: #{network_forward.1} parent=0 // pred_fallthru
    _
  // Predicated region
  $region14: #{network_forward.1} parent=0 // pred_check
    _
  $region15: #{network_forward.1} parent=0 // pred_check_branch
    %21 = sbr.rel (0) target = $region17
  $region16: #{network_forward.1} parent=0 // pred_region
    _
  $region17: #{network_forward.1} parent=0 // pred_fallthru
    _
  // Predicated region
  $region18: #{network_forward.1} parent=0 // pred_check
    _
  $region19: #{network_forward.1} parent=0 // pred_check_branch
    %23 = sbr.rel (0) target = $region21
  $region20: #{network_forward.1} parent=0 // pred_region
    _
  $region21: #{network_forward.1} parent=0 // pred_fallthru
    _
  // Predicated region
  $region22: #{network_forward.1} parent=0 // pred_check
    _
  $region23: #{network_forward.1} parent=0 // pred_check_branch
    %25 = sbr.rel (0) target = $region25
  $region24: #{network_forward.1} parent=0 // pred_region
    _
  $region25: #{network_forward.1} parent=0 // pred_fallthru
    _
  // Predicated region
  $region26: #{network_forward.1} parent=0 // pred_check
    _
  $region27: #{network_forward.1} parent=0 // pred_check_branch
    %27 = sbr.rel (0) target = $region29
  $region28: #{network_forward.1} parent=0 // pred_region
    _
  $region29: #{network_forward.1} parent=0 // pred_fallthru
    _
  %v28 = vld [vmem:[%s0] sm:$0xff]
  %v29 = vld [vmem:[%s0 + $0x8] sm:$0xff]
  %v30 = vld [vmem:[%s0 + $0x10] sm:$0xff]
  %v31 = vld [vmem:[%s0 + $0x18] sm:$0xf]
  %v32 = vld [vmem:[%s1] sm:$0xff]
  %v33 = vld [vmem:[%s1 + $0x8] sm:$0xff]
  %v34 = vld [vmem:[%s1 + $0x10] sm:$0xff]
  %v35 = vld [vmem:[%s1 + $0x18] sm:$0xff]
  %v36 = vld [vmem:[%s1 + $0x20] sm:$0xff]
  %v37 = vld [vmem:[%s1 + $0x28] sm:$0xff]
  %v38 = vld [vmem:[%s1 + $0x30] sm:$0xff]
  %v39 = vld [vmem:[%s1 + $0x38] sm:$0xff]
  %v40 = vld [vmem:[%s2] sm:$0xff]
  %v41 = vld [vmem:[%s2 + $0x8] sm:$0xff]
  %v42 = vld [vmem:[%s2 + $0x10] sm:$0xff]
  %v43 = vld [vmem:[%s2 + $0x18] sm:$0xff]
  %v44 = vld [vmem:[%s2 + $0x20] sm:$0xff]
  %v45 = vld [vmem:[%s2 + $0x28] sm:$0xff]
  %v46 = vld [vmem:[%s2 + $0x30] sm:$0xff]
  %v47 = vld [vmem:[%s2 + $0x38] sm:$0xff]
  %49 = vset.pattern.permute.xlu0 0
  %50 = vperm.xlu0 %49, %v40
  %v51 = vpop.permute.xlu0 %50
  %54 = vset.pattern.permute.xlu0 0
  %55 = vperm.xlu0 %54, %v41
  %v56 = vpop.permute.xlu0 %55
  %59 = vset.pattern.permute.xlu0 0
  %60 = vperm.xlu0 %59, %v42
  %v61 = vpop.permute.xlu0 %60
  %64 = vset.pattern.permute.xlu0 0
  %65 = vperm.xlu0 %64, %v43
  %v66 = vpop.permute.xlu0 %65
  %69 = vset.pattern.permute.xlu0 0
  %70 = vperm.xlu0 %69, %v44
  %v71 = vpop.permute.xlu0 %70
  %74 = vset.pattern.permute.xlu0 0
  %75 = vperm.xlu0 %74, %v45
  %v76 = vpop.permute.xlu0 %75
  %79 = vset.pattern.permute.xlu0 0
  %80 = vperm.xlu0 %79, %v46
  %v81 = vpop.permute.xlu0 %80
  %84 = vset.pattern.permute.xlu0 0
  %85 = vperm.xlu0 %84, %v47
  %v86 = vpop.permute.xlu0 %85
  %vm88 = vcmask 228352
  %v90 = vsel %vm88, %v32, 0
  %v93 = vsel %vm88, %v33, 0
  %v96 = vsel %vm88, %v34, 0
  %v99 = vsel %vm88, %v35, 0
  %v102 = vsel %vm88, %v36, 0
  %v105 = vsel %vm88, %v37, 0
  %v108 = vsel %vm88, %v38, 0
  %v111 = vsel %vm88, %v39, 0
  %vm113 = vcmask 1043456
  %v115 = vsel %vm113, %v31, 0
  %117 = vmatpush.msra.mxu0 0.0
  %118 = vmatpush.msra.mxu0 0.0
  %119 = vmatpush.msra.mxu0 0.0
  %120 = vmatpush.msra.mxu0 0.0
  %121 = vmatpush.msra.mxu0 0.0
  %122 = vmatpush.msra.mxu0 0.0
  %123 = vmatpush.msra.mxu0 0.0
  %124 = vmatpush.msra.mxu0 0.0
  %125 = vmatpush.msra.mxu0 0.0
  %126 = vmatpush.msra.mxu0 0.0
  %127 = vmatpush.msra.mxu0 0.0
  %128 = vmatpush.msra.mxu0 0.0
  %129 = vmatpush.msra.mxu0 %v115
  %130 = vmatpush.msra.mxu0 %v30
  %131 = vmatpush.msra.mxu0 %v29
  %132 = vmatpush.msra.mxu0 %v28
  %133 = vmatmul.f32.gmra.mxu0 %v90
  %v134 = vpop.f32.mrf.mxu0
  %v135 = vadd.f32 %v51, %v134
  %136 = vmatmul.f32.gmra.mxu0 %v93
  %v137 = vpop.f32.mrf.mxu0
  %v138 = vadd.f32 %v56, %v137
  %139 = vmatmul.f32.gmra.mxu0 %v96
  %v140 = vpop.f32.mrf.mxu0
  %v141 = vadd.f32 %v61, %v140
  %142 = vmatmul.f32.gmra.mxu0 %v99
  %v143 = vpop.f32.mrf.mxu0
  %v144 = vadd.f32 %v66, %v143
  %145 = vmatmul.f32.gmra.mxu0 %v102
  %v146 = vpop.f32.mrf.mxu0
  %v147 = vadd.f32 %v71, %v146
  %148 = vmatmul.f32.gmra.mxu0 %v105
  %v149 = vpop.f32.mrf.mxu0
  %v150 = vadd.f32 %v76, %v149
  %151 = vmatmul.f32.gmra.mxu0 %v108
  %v152 = vpop.f32.mrf.mxu0
  %v153 = vadd.f32 %v81, %v152
  %154 = vmatmul.f32.gmra.mxu0 %v111
  %v155 = vpop.f32.mrf.mxu0
  %v156 = vadd.f32 %v86, %v155
  %157 = vdwg.mxu0
  %v158 = vmax.f32 %v135, 0.0
  %v159 = vmax.f32 %v138, 0.0
  %v160 = vmax.f32 %v141, 0.0
  %v161 = vmax.f32 %v144, 0.0
  %v162 = vmax.f32 %v147, 0.0
  %v163 = vmax.f32 %v150, 0.0
  %v164 = vmax.f32 %v153, 0.0
  %v165 = vmax.f32 %v156, 0.0
  %v166 = vld [vmem:[%s3] sm:$0xff]
  %v167 = vld [vmem:[%s3 + $0x8] sm:$0xff]
  %v168 = vld [vmem:[%s3 + $0x10] sm:$0xff]
  %v169 = vld [vmem:[%s3 + $0x18] sm:$0xff]
  %v170 = vld [vmem:[%s3 + $0x20] sm:$0xff]
  %v171 = vld [vmem:[%s3 + $0x28] sm:$0xff]
  %v172 = vld [vmem:[%s3 + $0x30] sm:$0xff]
  %v173 = vld [vmem:[%s3 + $0x38] sm:$0xff]
  %v174 = vld [vmem:[%s3 + $0x40] sm:$0xff]
  %v175 = vld [vmem:[%s3 + $0x48] sm:$0xff]
  %v176 = vld [vmem:[%s3 + $0x50] sm:$0xff]
  %v177 = vld [vmem:[%s3 + $0x58] sm:$0xff]
  %v178 = vld [vmem:[%s3 + $0x60] sm:$0xff]
  %v179 = vld [vmem:[%s3 + $0x68] sm:$0xff]
  %v180 = vld [vmem:[%s3 + $0x70] sm:$0xff]
  %v181 = vld [vmem:[%s3 + $0x78] sm:$0xff]
  %v182 = vld [vmem:[%s4] sm:$0xff]
  %v183 = vld [vmem:[%s4 + $0x8] sm:$0xff]
  %v184 = vld [vmem:[%s4 + $0x10] sm:$0xff]
  %v185 = vld [vmem:[%s4 + $0x18] sm:$0xff]
  %v186 = vld [vmem:[%s4 + $0x20] sm:$0xff]
  %v187 = vld [vmem:[%s4 + $0x28] sm:$0xff]
  %v188 = vld [vmem:[%s4 + $0x30] sm:$0xff]
  %v189 = vld [vmem:[%s4 + $0x38] sm:$0xff]
  %v190 = vld [vmem:[%s4 + $0x40] sm:$0xff]
  %v191 = vld [vmem:[%s4 + $0x48] sm:$0xff]
  %v192 = vld [vmem:[%s4 + $0x50] sm:$0xff]
  %v193 = vld [vmem:[%s4 + $0x58] sm:$0xff]
  %v194 = vld [vmem:[%s4 + $0x60] sm:$0xff]
  %v195 = vld [vmem:[%s4 + $0x68] sm:$0xff]
  %v196 = vld [vmem:[%s4 + $0x70] sm:$0xff]
  %v197 = vld [vmem:[%s4 + $0x78] sm:$0xff]
  %199 = vset.pattern.permute.xlu0 0
  %200 = vperm.xlu0 %199, %v182
  %v201 = vpop.permute.xlu0 %200
  %204 = vset.pattern.permute.xlu0 0
  %205 = vperm.xlu0 %204, %v183
  %v206 = vpop.permute.xlu0 %205
  %209 = vset.pattern.permute.xlu0 0
  %210 = vperm.xlu0 %209, %v184
  %v211 = vpop.permute.xlu0 %210
  %214 = vset.pattern.permute.xlu0 0
  %215 = vperm.xlu0 %214, %v185
  %v216 = vpop.permute.xlu0 %215
  %219 = vset.pattern.permute.xlu0 0
  %220 = vperm.xlu0 %219, %v186
  %v221 = vpop.permute.xlu0 %220
  %224 = vset.pattern.permute.xlu0 0
  %225 = vperm.xlu0 %224, %v187
  %v226 = vpop.permute.xlu0 %225
  %229 = vset.pattern.permute.xlu0 0
  %230 = vperm.xlu0 %229, %v188
  %v231 = vpop.permute.xlu0 %230
  %234 = vset.pattern.permute.xlu0 0
  %235 = vperm.xlu0 %234, %v189
  %v236 = vpop.permute.xlu0 %235
  %239 = vset.pattern.permute.xlu0 0
  %240 = vperm.xlu0 %239, %v190
  %v241 = vpop.permute.xlu0 %240
  %244 = vset.pattern.permute.xlu0 0
  %245 = vperm.xlu0 %244, %v191
  %v246 = vpop.permute.xlu0 %245
  %249 = vset.pattern.permute.xlu0 0
  %250 = vperm.xlu0 %249, %v192
  %v251 = vpop.permute.xlu0 %250
  %254 = vset.pattern.permute.xlu0 0
  %255 = vperm.xlu0 %254, %v193
  %v256 = vpop.permute.xlu0 %255
  %259 = vset.pattern.permute.xlu0 0
  %260 = vperm.xlu0 %259, %v194
  %v261 = vpop.permute.xlu0 %260
  %264 = vset.pattern.permute.xlu0 0
  %265 = vperm.xlu0 %264, %v195
  %v266 = vpop.permute.xlu0 %265
  %269 = vset.pattern.permute.xlu0 0
  %270 = vperm.xlu0 %269, %v196
  %v271 = vpop.permute.xlu0 %270
  %274 = vset.pattern.permute.xlu0 0
  %275 = vperm.xlu0 %274, %v197
  %v276 = vpop.permute.xlu0 %275
  %vm278 = vcmask 523264
  %v280 = vsel %vm278, %v166, 0
  %v283 = vsel %vm278, %v167, 0
  %v286 = vsel %vm278, %v168, 0
  %v289 = vsel %vm278, %v169, 0
  %v292 = vsel %vm278, %v170, 0
  %v295 = vsel %vm278, %v171, 0
  %v298 = vsel %vm278, %v172, 0
  %v301 = vsel %vm278, %v173, 0
  %v304 = vsel %vm278, %v174, 0
  %v307 = vsel %vm278, %v175, 0
  %v310 = vsel %vm278, %v176, 0
  %v313 = vsel %vm278, %v177, 0
  %v316 = vsel %vm278, %v178, 0
  %v319 = vsel %vm278, %v179, 0
  %v322 = vsel %vm278, %v180, 0
  %v325 = vsel %vm278, %v181, 0
  %327 = vmatpush.msra.mxu0 0.0
  %328 = vmatpush.msra.mxu0 0.0
  %329 = vmatpush.msra.mxu0 0.0
  %330 = vmatpush.msra.mxu0 0.0
  %331 = vmatpush.msra.mxu0 0.0
  %332 = vmatpush.msra.mxu0 0.0
  %333 = vmatpush.msra.mxu0 0.0
  %334 = vmatpush.msra.mxu0 0.0
  %335 = vmatpush.msra.mxu0 %v165
  %336 = vmatpush.msra.mxu0 %v164
  %337 = vmatpush.msra.mxu0 %v163
  %338 = vmatpush.msra.mxu0 %v162
  %339 = vmatpush.msra.mxu0 %v161
  %340 = vmatpush.msra.mxu0 %v160
  %341 = vmatpush.msra.mxu0 %v159
  %342 = vmatpush.msra.mxu0 %v158
  %343 = vmatmul.f32.gmra.mxu0 %v280
  %v344 = vpop.f32.mrf.mxu0
  %v345 = vadd.f32 %v201, %v344
  %346 = vmatmul.f32.gmra.mxu0 %v283
  %v347 = vpop.f32.mrf.mxu0
  %v348 = vadd.f32 %v206, %v347
  %349 = vmatmul.f32.gmra.mxu0 %v286
  %v350 = vpop.f32.mrf.mxu0
  %v351 = vadd.f32 %v211, %v350
  %352 = vmatmul.f32.gmra.mxu0 %v289
  %v353 = vpop.f32.mrf.mxu0
  %v354 = vadd.f32 %v216, %v353
  %355 = vmatmul.f32.gmra.mxu0 %v292
  %v356 = vpop.f32.mrf.mxu0
  %v357 = vadd.f32 %v221, %v356
  %358 = vmatmul.f32.gmra.mxu0 %v295
  %v359 = vpop.f32.mrf.mxu0
  %v360 = vadd.f32 %v226, %v359
  %361 = vmatmul.f32.gmra.mxu0 %v298
  %v362 = vpop.f32.mrf.mxu0
  %v363 = vadd.f32 %v231, %v362
  %364 = vmatmul.f32.gmra.mxu0 %v301
  %v365 = vpop.f32.mrf.mxu0
  %v366 = vadd.f32 %v236, %v365
  %367 = vmatmul.f32.gmra.mxu0 %v304
  %v368 = vpop.f32.mrf.mxu0
  %v369 = vadd.f32 %v241, %v368
  %370 = vmatmul.f32.gmra.mxu0 %v307
  %v371 = vpop.f32.mrf.mxu0
  %v372 = vadd.f32 %v246, %v371
  %373 = vmatmul.f32.gmra.mxu0 %v310
  %v374 = vpop.f32.mrf.mxu0
  %v375 = vadd.f32 %v251, %v374
  %376 = vmatmul.f32.gmra.mxu0 %v313
  %v377 = vpop.f32.mrf.mxu0
  %v378 = vadd.f32 %v256, %v377
  %379 = vmatmul.f32.gmra.mxu0 %v316
  %v380 = vpop.f32.mrf.mxu0
  %v381 = vadd.f32 %v261, %v380
  %382 = vmatmul.f32.gmra.mxu0 %v319
  %v383 = vpop.f32.mrf.mxu0
  %v384 = vadd.f32 %v266, %v383
  %385 = vmatmul.f32.gmra.mxu0 %v322
  %v386 = vpop.f32.mrf.mxu0
  %v387 = vadd.f32 %v271, %v386
  %388 = vmatmul.f32.gmra.mxu0 %v325
  %v389 = vpop.f32.mrf.mxu0
  %v390 = vadd.f32 %v276, %v389
  %391 = vdwg.mxu0
  %v392 = vmax.f32 %v345, 0.0
  %v393 = vmax.f32 %v348, 0.0
  %v394 = vmax.f32 %v351, 0.0
  %v395 = vmax.f32 %v354, 0.0
  %v396 = vmax.f32 %v357, 0.0
  %v397 = vmax.f32 %v360, 0.0
  %v398 = vmax.f32 %v363, 0.0
  %v399 = vmax.f32 %v366, 0.0
  %v400 = vmax.f32 %v369, 0.0
  %v401 = vmax.f32 %v372, 0.0
  %v402 = vmax.f32 %v375, 0.0
  %v403 = vmax.f32 %v378, 0.0
  %v404 = vmax.f32 %v381, 0.0
  %v405 = vmax.f32 %v384, 0.0
  %v406 = vmax.f32 %v387, 0.0
  %v407 = vmax.f32 %v390, 0.0
  %v408 = vld [vmem:[%s5] sm:$0x1]
  %v409 = vld [vmem:[#allocation2] sm:$0x1]
  %411 = vset.pattern.permute.xlu0 0
  %412 = vperm.xlu0 %411, %v409
  %v413 = vpop.permute.xlu0 %412
  %v415 = vperm.slane %v413, 0
  %416 = vmatpush.msra.mxu0 %v407
  %417 = vmatpush.msra.mxu0 %v406
  %418 = vmatpush.msra.mxu0 %v405
  %419 = vmatpush.msra.mxu0 %v404
  %420 = vmatpush.msra.mxu0 %v403
  %421 = vmatpush.msra.mxu0 %v402
  %422 = vmatpush.msra.mxu0 %v401
  %423 = vmatpush.msra.mxu0 %v400
  %424 = vmatpush.msra.mxu0 %v399
  %425 = vmatpush.msra.mxu0 %v398
  %426 = vmatpush.msra.mxu0 %v397
  %427 = vmatpush.msra.mxu0 %v396
  %428 = vmatpush.msra.mxu0 %v395
  %429 = vmatpush.msra.mxu0 %v394
  %430 = vmatpush.msra.mxu0 %v393
  %431 = vmatpush.msra.mxu0 %v392
  %432 = vmatmul.f32.gmra.mxu0 %v408
  %v433 = vpop.f32.mrf.mxu0
  %v434 = vadd.f32 %v415, %v433
  %435 = vdwg.mxu0
  %436 = vst [vmem:[%s7] sm:$0x1] %v434
  // Predicated region
  $region30: #{network_forward.1} parent=0 // pred_check
    _
  $region31: #{network_forward.1} parent=0 // pred_check_branch
    %438 = sbr.rel (0) target = $region33
  $region32: #{network_forward.1} parent=0 // pred_region
    _
  $region33: #{network_forward.1} parent=0 // pred_fallthru
    _
  // Predicated region
  $region34: #{network_forward.1} parent=0 // pred_check
    _
  $region35: #{network_forward.1} parent=0 // pred_check_branch
    %440 = sbr.rel (0) target = $region37
  $region36: #{network_forward.1} parent=0 // pred_region
    _
  $region37: #{network_forward.1} parent=0 // pred_fallthru
    _

</llo_original>
